<compile_context>
chip_gen: v7x
topology: tpu7x:2x2x1
jax: 0.10.0
libtpu: 0.0.40
codegen_flags: <defaults>
</compile_context>

<pallas_src>
import jax
import jax.numpy as jnp
from jax.experimental import pallas as pl
from jax.experimental.pallas import tpu as pltpu


def _round_up(x, m):
    return (x + m - 1) // m * m


def rwkv_cmix_x060(x, time_maa_k, time_maa_r, wk, wv, wr,
                   attention_mask=None, row_tile=256, f_tile=512,
                   compute_dtype=jnp.bfloat16):
    """RWKV-6 channel mix.

    x:  (B, T, C)
    wk: (C, F)   key.weight^T
    wv: (F, C)   value.weight^T
    wr: (C, C)   receptance.weight^T
    """
    B, T, C = x.shape
    F = wk.shape[1]

    if attention_mask is not None:
        x = x * attention_mask[:, -T:, None].astype(x.dtype)

    # ---- row tiling over flattened (B*T, C) ------------------------------
    M = B * T
    if row_tile is None:
        row_tile = 256
    tm = _round_up(min(row_tile, _round_up(M, 8)), 8)
    n_rows = pl.cdiv(M, tm)
    M_pad = n_rows * tm

    xf = x.reshape(M, C)
    if M_pad != M:
        xf = jnp.pad(xf, ((0, M_pad - M), (0, 0)))

    # Previous-token row for row 0 of every row tile (its value only matters
    # when that row is NOT the first token of a sequence; otherwise the keep
    # mask below zeroes it).
    starts = jnp.arange(n_rows, dtype=jnp.int32) * tm
    prev_rows = xf[jnp.maximum(starts - 1, 0)].reshape(n_rows, 1, C)

    # 1.0 everywhere except rows that are the first token of a sequence
    # (those get a zero time-shift input, matching ZeroPad2d((0,0,1,-1))).
    keep = ((jnp.arange(M_pad, dtype=jnp.int32) % T) != 0)
    keep = keep.astype(jnp.float32).reshape(M_pad, 1)

    # Stacked token-mix coefficients: row 0 = time_maa_k, row 1 = time_maa_r.
    maa = jnp.stack([time_maa_k.reshape(C), time_maa_r.reshape(C)], axis=0)
    maa = maa.astype(jnp.float32).reshape(2, 1, C)

    # ---- F (ffn) tiling ---------------------------------------------------
    if f_tile is not None and F % f_tile == 0 and f_tile % 128 == 0:
        tf = f_tile
    else:
        tf = F
    nj = F // tf

    wk_c = wk.astype(compute_dtype)
    wv_c = wv.astype(compute_dtype)
    wr_c = wr.astype(compute_dtype)

    def kernel(x_ref, prev_ref, keep_ref, maa_ref, wk_ref, wv_ref, wr_ref,
               o_ref, xk_s, xr_s, kv_s):
        j = pl.program_id(1)

        @pl.when(j == 0)
        def _init():
            xv = x_ref[...].astype(jnp.float32)
            # time_shift within the tile: rolled[r] = xv[r-1]; row 0 comes
            # from the previous tile's last row; sequence-start rows -> 0.
            rolled = pltpu.roll(xv, shift=1, axis=0)
            r_idx = jax.lax.broadcasted_iota(jnp.int32, (tm, 1), 0)
            prev = prev_ref[0].astype(jnp.float32)              # (1, C)
            xsh = jnp.where(r_idx == 0, prev, rolled) * keep_ref[...]
            xx = xsh - xv
            mk = maa_ref[0]                                     # (1, C)
            mr = maa_ref[1]                                     # (1, C)
            xk_s[...] = (xv + xx * mk).astype(compute_dtype)
            xr_s[...] = (xv + xx * mr).astype(compute_dtype)
            kv_s[...] = jnp.zeros_like(kv_s)

        # k = relu(xk @ Wk_j)^2 in f32, then bf16 into the accumulating
        # kv matmul (f32 accumulation in VMEM scratch).
        k = jnp.dot(xk_s[...], wk_ref[...], preferred_element_type=jnp.float32)
        k = jnp.maximum(k, 0.0)
        k = k * k
        kv_s[...] += jnp.dot(k.astype(compute_dtype), wv_ref[...],
                             preferred_element_type=jnp.float32)

        @pl.when(j == pl.num_programs(1) - 1)
        def _finalize():
            r = jnp.dot(xr_s[...], wr_ref[...],
                        preferred_element_type=jnp.float32)
            o_ref[...] = (jax.nn.sigmoid(r) * kv_s[...]).astype(o_ref.dtype)

    out = pl.pallas_call(
        kernel,
        out_shape=jax.ShapeDtypeStruct((M_pad, C), x.dtype),
        grid_spec=pltpu.PrefetchScalarGridSpec(
            num_scalar_prefetch=0,
            grid=(n_rows, nj),
            in_specs=[
                pl.BlockSpec((tm, C), lambda i, j: (i, 0)),       # x rows
                pl.BlockSpec((1, 1, C), lambda i, j: (i, 0, 0)),  # prev-row carry
                pl.BlockSpec((tm, 1), lambda i, j: (i, 0)),       # seq-start mask
                pl.BlockSpec((2, 1, C), lambda i, j: (0, 0, 0)),  # time_maa_{k,r}
                pl.BlockSpec((C, tf), lambda i, j: (0, j)),       # key W^T slab
                pl.BlockSpec((tf, C), lambda i, j: (j, 0)),       # value W^T slab
                pl.BlockSpec((C, C), lambda i, j: (0, 0)),        # receptance W^T
            ],
            out_specs=pl.BlockSpec((tm, C), lambda i, j: (i, 0)),
            scratch_shapes=[
                pltpu.VMEM((tm, C), compute_dtype),   # xk (token-mixed)
                pltpu.VMEM((tm, C), compute_dtype),   # xr (token-mixed)
                pltpu.VMEM((tm, C), jnp.float32),     # kv accumulator
            ],
        ),
        compiler_params=pltpu.CompilerParams(
            dimension_semantics=("parallel", "arbitrary"),
            vmem_limit_bytes=64 * 1024 * 1024,
        ),
    )(xf, prev_rows, keep, maa, wk_c, wv_c, wr_c)

    return out[:M].reshape(B, T, C)


if __name__ == "__main__":
    # Small synthetic config consistent with the module.
    B, T, C, F = 2, 8, 32, 64          # batch, seq, n_embd, dim_ffn
    layer_id, n_layer = 1, 4

    key = jax.random.PRNGKey(0)
    k1, k2, k3, k4 = jax.random.split(key, 4)
    x = jax.random.normal(k1, (B, T, C), dtype=jnp.float32)

    # Same formulas as the torch __init__ for the time_maa params.
    ratio_1_to_almost0 = 1.0 - layer_id / n_layer
    ddd = jnp.arange(C, dtype=jnp.float32) / C
    time_maa_k = (1.0 - ddd ** ratio_1_to_almost0).reshape(1, 1, C)
    time_maa_r = (1.0 - ddd ** ratio_1_to_almost0).reshape(1, 1, C)

    wk = jax.random.normal(k2, (C, F), dtype=jnp.float32) * 0.02  # key:        C -> F
    wv = jax.random.normal(k3, (F, C), dtype=jnp.float32) * 0.02  # value:      F -> C
    wr = jax.random.normal(k4, (C, C), dtype=jnp.float32) * 0.02  # receptance: C -> C

    out = rwkv_cmix_x060(x, time_maa_k, time_maa_r, wk, wv, wr)
    out = jax.block_until_ready(out)

    # Pure-JAX f32 reference (kernel uses bf16 matmuls with f32 accumulation,
    # so compare with a modest tolerance).
    xsh = jnp.concatenate([jnp.zeros((B, 1, C), x.dtype), x[:, :-1, :]], axis=1)
    xx = xsh - x
    xk = x + xx * time_maa_k
    xr = x + xx * time_maa_r
    kk = jnp.maximum(xk @ wk, 0.0) ** 2
    kv = kk @ wv
    ref = jax.nn.sigmoid(xr @ wr) * kv

    assert out.shape == ref.shape
    err = float(jnp.max(jnp.abs(out - ref)))
    assert jnp.allclose(out, ref, atol=2e-3, rtol=2e-2), f"mismatch, max abs err={err}"

    print("KERNEL_OK")
</pallas_src>

<mosaic_0001>
module attributes {stable_mosaic.version = 11 : i64} {
  func.func @kernel(%arg0: i32, %arg1: i32, %arg2: memref<16x32xf32, #tpu.memory_space<vmem>>, %arg3: memref<1x1x32xf32, #tpu.memory_space<vmem>>, %arg4: memref<16x1xf32, #tpu.memory_space<vmem>>, %arg5: memref<2x1x32xf32, #tpu.memory_space<vmem>>, %arg6: memref<32x64xbf16, #tpu.memory_space<vmem>>, %arg7: memref<64x32xbf16, #tpu.memory_space<vmem>>, %arg8: memref<32x32xbf16, #tpu.memory_space<vmem>>, %arg9: memref<16x32xf32, #tpu.memory_space<vmem>>, %arg10: memref<16x32xbf16, #tpu.memory_space<vmem>>, %arg11: memref<16x32xbf16, #tpu.memory_space<vmem>>, %arg12: memref<16x32xf32, #tpu.memory_space<vmem>>) attributes {dimension_semantics = [#tpu.dimension_semantics<parallel>, #tpu.dimension_semantics<arbitrary>], iteration_bounds = array<i64: 1, 1>, scalar_prefetch = 0 : i64, scratch_operands = 3 : i64, tpu.core_type = #tpu.core_type<tc>, window_params = [{transform_indices = @transform_0, window_bounds = array<i64: 16, 32>}, {transform_indices = @transform_1, window_bounds = array<i64: 1, 1, 32>}, {transform_indices = @transform_2, window_bounds = array<i64: 16, 1>}, {pipeline_mode = #tpu.pipeline_mode<synchronous>, transform_indices = @transform_3, window_bounds = array<i64: 2, 1, 32>}, {transform_indices = @transform_4, window_bounds = array<i64: 32, 64>}, {transform_indices = @transform_5, window_bounds = array<i64: 64, 32>}, {pipeline_mode = #tpu.pipeline_mode<synchronous>, transform_indices = @transform_6, window_bounds = array<i64: 32, 32>}, {transform_indices = @transform_7, window_bounds = array<i64: 16, 32>}]} {
    %c0_i32 = arith.constant 0 : i32
    %0 = arith.cmpi eq, %arg1, %c0_i32 : i32
    %1 = arith.extui %0 : i1 to i32
    %c0_i32_0 = arith.constant 0 : i32
    %2 = arith.cmpi ne, %1, %c0_i32_0 : i32
    scf.if %2 {
      %c0_14 = arith.constant 0 : index
      %c0_15 = arith.constant 0 : index
      %18 = vector.load %arg2[%c0_14, %c0_15] : memref<16x32xf32, #tpu.memory_space<vmem>>, vector<16x32xf32>
      %c1_i32 = arith.constant 1 : i32
      %19 = tpu.dynamic_rotate %18 by %c1_i32 dim 0 : vector<16x32xf32>, i32 -> vector<16x32xf32>
      %20 = tpu.iota {dimensions = array<i32: 0>} : vector<16x1xi32>
      %c0_16 = arith.constant 0 : index
      %c0_17 = arith.constant 0 : index
      %c0_18 = arith.constant 0 : index
      %21 = vector.load %arg3[%c0_16, %c0_17, %c0_18] : memref<1x1x32xf32, #tpu.memory_space<vmem>>, vector<1x1x32xf32>
      %22 = vector.shape_cast %21 : vector<1x1x32xf32> to vector<1x32xf32>
      %c0_i32_19 = arith.constant 0 : i32
      %23 = vector.broadcast %c0_i32_19 : i32 to vector<16x1xi32>
      %24 = arith.cmpi eq, %20, %23 : vector<16x1xi32>
      %25 = vector.shape_cast %24 : vector<16x1xi1> to vector<16x1xi1>
      %26 = vector.broadcast %25 : vector<16x1xi1> to vector<16x32xi1>
      %27 = vector.shape_cast %22 : vector<1x32xf32> to vector<1x32xf32>
      %28 = vector.broadcast %27 : vector<1x32xf32> to vector<16x32xf32>
      %29 = arith.select %26, %28, %19 : vector<16x32xi1>, vector<16x32xf32>
      %c0_20 = arith.constant 0 : index
      %c0_21 = arith.constant 0 : index
      %30 = vector.load %arg4[%c0_20, %c0_21] : memref<16x1xf32, #tpu.memory_space<vmem>>, vector<16x1xf32>
      %31 = vector.broadcast %30 : vector<16x1xf32> to vector<16x32xf32>
      %32 = arith.mulf %29, %31 : vector<16x32xf32>
      %33 = arith.subf %32, %18 : vector<16x32xf32>
      %c0_22 = arith.constant 0 : index
      %c0_23 = arith.constant 0 : index
      %c0_24 = arith.constant 0 : index
      %34 = vector.load %arg5[%c0_22, %c0_23, %c0_24] : memref<2x1x32xf32, #tpu.memory_space<vmem>>, vector<1x1x32xf32>
      %35 = vector.shape_cast %34 : vector<1x1x32xf32> to vector<1x32xf32>
      %c1 = arith.constant 1 : index
      %c0_25 = arith.constant 0 : index
      %c0_26 = arith.constant 0 : index
      %36 = vector.load %arg5[%c1, %c0_25, %c0_26] : memref<2x1x32xf32, #tpu.memory_space<vmem>>, vector<1x1x32xf32>
      %37 = vector.shape_cast %36 : vector<1x1x32xf32> to vector<1x32xf32>
      %38 = vector.broadcast %35 : vector<1x32xf32> to vector<16x32xf32>
      %39 = arith.mulf %33, %38 : vector<16x32xf32>
      %40 = arith.addf %18, %39 : vector<16x32xf32>
      %41 = arith.truncf %40 : vector<16x32xf32> to vector<16x32xbf16>
      %c0_27 = arith.constant 0 : index
      %c0_28 = arith.constant 0 : index
      %42 = vector.load %arg10[%c0_27, %c0_28] : memref<16x32xbf16, #tpu.memory_space<vmem>>, vector<16x32xbf16>
      tpu.vector_store %arg10[%c0_27, %c0_28], %41 {strides = array<i32>} : memref<16x32xbf16, #tpu.memory_space<vmem>>, vector<16x32xbf16>,
      %43 = vector.broadcast %37 : vector<1x32xf32> to vector<16x32xf32>
      %44 = arith.mulf %33, %43 : vector<16x32xf32>
      %45 = arith.addf %18, %44 : vector<16x32xf32>
      %46 = arith.truncf %45 : vector<16x32xf32> to vector<16x32xbf16>
      %c0_29 = arith.constant 0 : index
      %c0_30 = arith.constant 0 : index
      %47 = vector.load %arg11[%c0_29, %c0_30] : memref<16x32xbf16, #tpu.memory_space<vmem>>, vector<16x32xbf16>
      tpu.vector_store %arg11[%c0_29, %c0_30], %46 {strides = array<i32>} : memref<16x32xbf16, #tpu.memory_space<vmem>>, vector<16x32xbf16>,
      %cst_31 = arith.constant 0.000000e+00 : f32
      %48 = vector.broadcast %cst_31 : f32 to vector<16x32xf32>
      %c0_32 = arith.constant 0 : index
      %c0_33 = arith.constant 0 : index
      %49 = vector.load %arg12[%c0_32, %c0_33] : memref<16x32xf32, #tpu.memory_space<vmem>>, vector<16x32xf32>
      tpu.vector_store %arg12[%c0_32, %c0_33], %48 {strides = array<i32>} : memref<16x32xf32, #tpu.memory_space<vmem>>, vector<16x32xf32>,
    } else {
    }
    %c0 = arith.constant 0 : index
    %c0_1 = arith.constant 0 : index
    %3 = vector.load %arg10[%c0, %c0_1] : memref<16x32xbf16, #tpu.memory_space<vmem>>, vector<16x32xbf16>
    %c0_2 = arith.constant 0 : index
    %c0_3 = arith.constant 0 : index
    %4 = vector.load %arg6[%c0_2, %c0_3] : memref<32x64xbf16, #tpu.memory_space<vmem>>, vector<32x64xbf16>
    %cst = arith.constant dense<0.000000e+00> : vector<16x64xf32>
    %5 = tpu.matmul %3, %4, %cst {dimension_numbers = #tpu.dot_dimension_numbers<[1], [0], [0], [1], [0, 0, 1, 1], [], []>} : vector<16x32xbf16>, vector<32x64xbf16>, vector<16x64xf32> -> vector<16x64xf32>
    %cst_4 = arith.constant 0.000000e+00 : f32
    %6 = vector.broadcast %cst_4 : f32 to vector<16x64xf32>
    %7 = arith.maximumf %5, %6 : vector<16x64xf32>
    %8 = arith.mulf %7, %7 : vector<16x64xf32>
    %c0_5 = arith.constant 0 : index
    %c0_6 = arith.constant 0 : index
    %9 = vector.load %arg12[%c0_5, %c0_6] : memref<16x32xf32, #tpu.memory_space<vmem>>, vector<16x32xf32>
    %10 = arith.truncf %8 : vector<16x64xf32> to vector<16x64xbf16>
    %c0_7 = arith.constant 0 : index
    %c0_8 = arith.constant 0 : index
    %11 = vector.load %arg7[%c0_7, %c0_8] : memref<64x32xbf16, #tpu.memory_space<vmem>>, vector<64x32xbf16>
    %cst_9 = arith.constant dense<0.000000e+00> : vector<16x32xf32>
    %12 = tpu.matmul %10, %11, %cst_9 {dimension_numbers = #tpu.dot_dimension_numbers<[1], [0], [0], [1], [0, 0, 1, 1], [], []>} : vector<16x64xbf16>, vector<64x32xbf16>, vector<16x32xf32> -> vector<16x32xf32>
    %13 = arith.addf %9, %12 : vector<16x32xf32>
    %c0_10 = arith.constant 0 : index
    %c0_11 = arith.constant 0 : index
    %14 = vector.load %arg12[%c0_10, %c0_11] : memref<16x32xf32, #tpu.memory_space<vmem>>, vector<16x32xf32>
    tpu.vector_store %arg12[%c0_10, %c0_11], %13 {strides = array<i32>} : memref<16x32xf32, #tpu.memory_space<vmem>>, vector<16x32xf32>,
    %c0_i32_12 = arith.constant 0 : i32
    %15 = arith.cmpi eq, %arg1, %c0_i32_12 : i32
    %16 = arith.extui %15 : i1 to i32
    %c0_i32_13 = arith.constant 0 : i32
    %17 = arith.cmpi ne, %16, %c0_i32_13 : i32
    scf.if %17 {
      %c0_14 = arith.constant 0 : index
      %c0_15 = arith.constant 0 : index
      %18 = vector.load %arg11[%c0_14, %c0_15] : memref<16x32xbf16, #tpu.memory_space<vmem>>, vector<16x32xbf16>
      %c0_16 = arith.constant 0 : index
      %c0_17 = arith.constant 0 : index
      %19 = vector.load %arg8[%c0_16, %c0_17] : memref<32x32xbf16, #tpu.memory_space<vmem>>, vector<32x32xbf16>
      %cst_18 = arith.constant dense<0.000000e+00> : vector<16x32xf32>
      %20 = tpu.matmul %18, %19, %cst_18 {dimension_numbers = #tpu.dot_dimension_numbers<[1], [0], [0], [1], [0, 0, 1, 1], [], []>} : vector<16x32xbf16>, vector<32x32xbf16>, vector<16x32xf32> -> vector<16x32xf32>
      %21 = arith.negf %20 : vector<16x32xf32>
      %22 = math.exp %21 : vector<16x32xf32>
      %cst_19 = arith.constant 1.000000e+00 : f32
      %23 = vector.broadcast %cst_19 : f32 to vector<16x32xf32>
      %24 = arith.addf %23, %22 : vector<16x32xf32>
      %25 = arith.divf %23, %24 : vector<16x32xf32>
      %c0_20 = arith.constant 0 : index
      %c0_21 = arith.constant 0 : index
      %26 = vector.load %arg12[%c0_20, %c0_21] : memref<16x32xf32, #tpu.memory_space<vmem>>, vector<16x32xf32>
      %27 = arith.mulf %25, %26 : vector<16x32xf32>
      %c0_22 = arith.constant 0 : index
      %c0_23 = arith.constant 0 : index
      %28 = vector.load %arg9[%c0_22, %c0_23] : memref<16x32xf32, #tpu.memory_space<vmem>>, vector<16x32xf32>
      tpu.vector_store %arg9[%c0_22, %c0_23], %27 {strides = array<i32>} : memref<16x32xf32, #tpu.memory_space<vmem>>, vector<16x32xf32>,
    } else {
    }
    return
  }
  func.func @transform_0(%arg0: i32, %arg1: i32) -> (i32, i32) {
    %c0_i32 = arith.constant 0 : i32
    %c0_i32_0 = arith.constant 0 : i32
    return %arg0, %c0_i32 : i32, i32
  }
  func.func @transform_1(%arg0: i32, %arg1: i32) -> (i32, i32, i32) {
    %c0_i32 = arith.constant 0 : i32
    %c0_i32_0 = arith.constant 0 : i32
    %c0_i32_1 = arith.constant 0 : i32
    return %arg0, %c0_i32, %c0_i32_0 : i32, i32, i32
  }
  func.func @transform_2(%arg0: i32, %arg1: i32) -> (i32, i32) {
    %c0_i32 = arith.constant 0 : i32
    %c0_i32_0 = arith.constant 0 : i32
    return %arg0, %c0_i32 : i32, i32
  }
  func.func @transform_3(%arg0: i32, %arg1: i32) -> (i32, i32, i32) {
    %c0_i32 = arith.constant 0 : i32
    %c0_i32_0 = arith.constant 0 : i32
    %c0_i32_1 = arith.constant 0 : i32
    %c0_i32_2 = arith.constant 0 : i32
    return %c0_i32, %c0_i32_0, %c0_i32_1 : i32, i32, i32
  }
  func.func @transform_4(%arg0: i32, %arg1: i32) -> (i32, i32) {
    %c0_i32 = arith.constant 0 : i32
    %c0_i32_0 = arith.constant 0 : i32
    return %c0_i32, %arg1 : i32, i32
  }
  func.func @transform_5(%arg0: i32, %arg1: i32) -> (i32, i32) {
    %c0_i32 = arith.constant 0 : i32
    %c0_i32_0 = arith.constant 0 : i32
    return %arg1, %c0_i32 : i32, i32
  }
  func.func @transform_6(%arg0: i32, %arg1: i32) -> (i32, i32) {
    %c0_i32 = arith.constant 0 : i32
    %c0_i32_0 = arith.constant 0 : i32
    %c0_i32_1 = arith.constant 0 : i32
    return %c0_i32, %c0_i32_0 : i32, i32
  }
  func.func @transform_7(%arg0: i32, %arg1: i32) -> (i32, i32) {
    %c0_i32 = arith.constant 0 : i32
    %c0_i32_0 = arith.constant 0 : i32
    return %arg0, %c0_i32 : i32, i32
  }
}

</mosaic_0001>

<llo_original>
// kernel: tpu_custom_call.1
$region0: #{tpu_custom_call.1}
  #allocation0 [shape = 'u32[]', space=smem, size = 0x4, offset = 0x4, fixed_abs, tag = 'smem constant byte address 0x4 - core index']
  #allocation1 [shape = 'u32[144,128]{1,0:T(1,128)}', space=vmem, size = 0x12000, scoped, tag = 'internal scratch']
  #allocation2 [shape = 'bf16[16,32]{1,0:T(16,128)(2,1)}', space=vmem, size = 0x1000, scoped, tag = 'scratch operand']
  #allocation3 [shape = 'bf16[16,32]{1,0:T(16,128)(2,1)}', space=vmem, size = 0x1000, scoped, tag = 'scratch operand']
  #allocation4 [shape = 'f32[16,32]{1,0:T(8,128)}', space=vmem, size = 0x2000, scoped, tag = 'scratch operand']
  %s0 = inlined_call_operand.hbm [shape: f32[16,32], index: 0, kind: input, shape index: {}]
  %s1 = inlined_call_operand.hbm [shape: f32[1,1,32], index: 1, kind: input, shape index: {}]
  %s2 = inlined_call_operand.hbm [shape: f32[16,1], index: 2, kind: input, shape index: {}]
  %s3 = inlined_call_operand.hbm [shape: f32[2,1,32], index: 3, kind: input, shape index: {}]
  %s4 = inlined_call_operand.hbm [shape: bf16[32,64], index: 4, kind: input, shape index: {}]
  %s5 = inlined_call_operand.hbm [shape: bf16[64,32], index: 5, kind: input, shape index: {}]
  %s6 = inlined_call_operand.hbm [shape: bf16[32,32], index: 6, kind: input, shape index: {}]
  %s7 = inlined_call_operand.hbm [shape: f32[16,32], index: 7, kind: output, shape index: {}]
  %s8 = sld [smem:[#allocation0]]
  $region74: #{tpu_custom_call.1} parent=0
    _
  %s10 = ssub.s32 1, %s8
  %s11 = scalar_select 0, %s10, %s8
  $region1: #{tpu_custom_call.1} parent=0
    #allocation5 [shape = 'u8[8192]{0}', space=vmem, size = 0x2000, scoped, tag = 'input window, operand 0, single buffered']
    #allocation6 [shape = 's32[1]{0}', space=sflag, size = 0x4, scoped, tag = 'scoped memory for tpu_custom_call.1']
    #allocation7 [shape = 's32[1]{0}', space=sflag, size = 0x4, scoped, tag = 'scoped memory for tpu_custom_call.1']
    #allocation8 [shape = 'u8[512]{0}', space=vmem, size = 0x400, scoped, tag = 'input window, operand 1, single buffered']
    #allocation9 [shape = 's32[1]{0}', space=sflag, size = 0x4, scoped, tag = 'scoped memory for tpu_custom_call.1']
    #allocation10 [shape = 'u8[8192]{0}', space=vmem, size = 0x2000, scoped, tag = 'input window, operand 2, single buffered']
    #allocation11 [shape = 'u8[1024]{0}', space=vmem, size = 0x400, scoped, tag = 'input window, operand 3, single buffered']
    #allocation12 [shape = 's32[1]{0}', space=sflag, size = 0x4, scoped, tag = 'scoped memory for tpu_custom_call.1']
    #allocation13 [shape = 'u8[8192]{0}', space=vmem, size = 0x2000, scoped, tag = 'input window, operand 4, single buffered']
    #allocation14 [shape = 'u8[16384]{0}', space=vmem, size = 0x4000, scoped, tag = 'input window, operand 5, single buffered']
    #allocation15 [shape = 's32[1]{0}', space=sflag, size = 0x4, scoped, tag = 'scoped memory for tpu_custom_call.1']
    #allocation16 [shape = 'u8[8192]{0}', space=vmem, size = 0x2000, scoped, tag = 'input window, operand 6, single buffered']
    #allocation17 [shape = 'u8[8192]{0}', space=vmem, size = 0x2000, scoped, tag = 'output window, operand 0, single buffered']
    %12 = vsyncpa [#allocation6], 0
    %13 = vsyncpa [#allocation9], 0
    %14 = vsyncpa [#allocation12], 0
    %15 = vsyncpa [#allocation15], 0
    %16 = vsyncpa [#allocation7], 0
    // Predicated region
    $region2: #{tpu_custom_call.1} parent=1 // pred_check
      _
    $region3: #{tpu_custom_call.1} parent=1 // pred_check_branch
      %18 = sbr.rel (0) target = $region5
    $region4: #{tpu_custom_call.1} parent=1 // pred_region
      %s20 = ssub.s32 256, 256
      %21 = vsyncadd [#allocation6], %s20
      %s22 = sshll.u32 [#allocation5], 4
      %s23 = int_to_ptr.vmem [resolvable:$true] %s22
      %28 = dma.hbm_to_vmem [thread:$0]  %s0, 256, %s23, [#allocation6], 128, 128, 8
    $region5: #{tpu_custom_call.1} parent=1 // pred_fallthru
      _
    // Predicated region
    $region6: #{tpu_custom_call.1} parent=1 // pred_check
      _
    $region7: #{tpu_custom_call.1} parent=1 // pred_check_branch
      %30 = sbr.rel (0) target = $region9
    $region8: #{tpu_custom_call.1} parent=1 // pred_region
      %s32 = ssub.s32 16, 16
      %33 = vsyncadd [#allocation9], %s32
      %s35 = sshll.u32 [#allocation8], 4
      %s36 = int_to_ptr.vmem [resolvable:$true] %s35
      %38 = dma.hbm_to_vmem [thread:$0]  %s1, 16, %s36, [#allocation9]
    $region9: #{tpu_custom_call.1} parent=1 // pred_fallthru
      _
    // Predicated region
    $region10: #{tpu_custom_call.1} parent=1 // pred_check
      _
    $region11: #{tpu_custom_call.1} parent=1 // pred_check_branch
      %40 = sbr.rel (0) target = $region13
    $region12: #{tpu_custom_call.1} parent=1 // pred_region
      %s42 = ssub.s32 256, 256
      %43 = vsyncadd [#allocation9], %s42
      %s44 = sshll.u32 [#allocation10], 4
      %s45 = int_to_ptr.vmem [resolvable:$true] %s44
      %50 = dma.hbm_to_vmem [thread:$0]  %s2, 256, %s45, [#allocation9], 128, 128, 8
    $region13: #{tpu_custom_call.1} parent=1 // pred_fallthru
      _
    // Predicated region
    $region14: #{tpu_custom_call.1} parent=1 // pred_check
      _
    $region15: #{tpu_custom_call.1} parent=1 // pred_check_branch
      %52 = sbr.rel (0) target = $region17
    $region16: #{tpu_custom_call.1} parent=1 // pred_region
      %s54 = ssub.s32 32, 32
      %55 = vsyncadd [#allocation12], %s54
      %s56 = sshll.u32 [#allocation11], 4
      %s57 = int_to_ptr.vmem [resolvable:$true] %s56
      %62 = dma.hbm_to_vmem [thread:$0]  %s3, 32, %s57, [#allocation12], 16, 16, 1
    $region17: #{tpu_custom_call.1} parent=1 // pred_fallthru
      _
    // Predicated region
    $region18: #{tpu_custom_call.1} parent=1 // pred_check
      _
    $region19: #{tpu_custom_call.1} parent=1 // pred_check_branch
      %64 = sbr.rel (0) target = $region21
    $region20: #{tpu_custom_call.1} parent=1 // pred_region
      %s66 = ssub.s32 256, 256
      %67 = vsyncadd [#allocation12], %s66
      %s68 = sshll.u32 [#allocation13], 4
      %s69 = int_to_ptr.vmem [resolvable:$true] %s68
      %74 = dma.hbm_to_vmem [thread:$0]  %s4, 256, %s69, [#allocation12], 64, 64, 4
    $region21: #{tpu_custom_call.1} parent=1 // pred_fallthru
      _
    // Predicated region
    $region22: #{tpu_custom_call.1} parent=1 // pred_check
      _
    $region23: #{tpu_custom_call.1} parent=1 // pred_check_branch
      %76 = sbr.rel (0) target = $region25
    $region24: #{tpu_custom_call.1} parent=1 // pred_region
      %s78 = ssub.s32 512, 512
      %79 = vsyncadd [#allocation15], %s78
      %s80 = sshll.u32 [#allocation14], 4
      %s81 = int_to_ptr.vmem [resolvable:$true] %s80
      %86 = dma.hbm_to_vmem [thread:$0]  %s5, 512, %s81, [#allocation15], 64, 64, 4
    $region25: #{tpu_custom_call.1} parent=1 // pred_fallthru
      _
    // Predicated region
    $region26: #{tpu_custom_call.1} parent=1 // pred_check
      _
    $region27: #{tpu_custom_call.1} parent=1 // pred_check_branch
      %88 = sbr.rel (0) target = $region29
    $region28: #{tpu_custom_call.1} parent=1 // pred_region
      %s90 = ssub.s32 256, 256
      %91 = vsyncadd [#allocation15], %s90
      %s92 = sshll.u32 [#allocation16], 4
      %s93 = int_to_ptr.vmem [resolvable:$true] %s92
      %98 = dma.hbm_to_vmem [thread:$0]  %s6, 256, %s93, [#allocation15], 64, 64, 4
    $region29: #{tpu_custom_call.1} parent=1 // pred_fallthru
      _
    // Predicated region
    $region30: #{tpu_custom_call.1} parent=1 // pred_check
      _
    $region31: #{tpu_custom_call.1} parent=1 // pred_check_branch
      %100 = sbr.rel (0) target = $region33
    $region32: #{tpu_custom_call.1} parent=1 // pred_region
      %101 = dma.done [#allocation6], 256
    $region33: #{tpu_custom_call.1} parent=1 // pred_fallthru
      _
    // Predicated region
    $region34: #{tpu_custom_call.1} parent=1 // pred_check
      _
    $region35: #{tpu_custom_call.1} parent=1 // pred_check_branch
      %103 = sbr.rel (0) target = $region37
    $region36: #{tpu_custom_call.1} parent=1 // pred_region
      %104 = dma.done [#allocation9], 16
    $region37: #{tpu_custom_call.1} parent=1 // pred_fallthru
      _
    // Predicated region
    $region38: #{tpu_custom_call.1} parent=1 // pred_check
      _
    $region39: #{tpu_custom_call.1} parent=1 // pred_check_branch
      %106 = sbr.rel (0) target = $region41
    $region40: #{tpu_custom_call.1} parent=1 // pred_region
      %107 = dma.done [#allocation9], 256
    $region41: #{tpu_custom_call.1} parent=1 // pred_fallthru
      _
    // Predicated region
    $region42: #{tpu_custom_call.1} parent=1 // pred_check
      _
    $region43: #{tpu_custom_call.1} parent=1 // pred_check_branch
      %109 = sbr.rel (0) target = $region45
    $region44: #{tpu_custom_call.1} parent=1 // pred_region
      %110 = dma.done [#allocation12], 32
    $region45: #{tpu_custom_call.1} parent=1 // pred_fallthru
      _
    // Predicated region
    $region46: #{tpu_custom_call.1} parent=1 // pred_check
      _
    $region47: #{tpu_custom_call.1} parent=1 // pred_check_branch
      %112 = sbr.rel (0) target = $region49
    $region48: #{tpu_custom_call.1} parent=1 // pred_region
      %113 = dma.done [#allocation12], 256
    $region49: #{tpu_custom_call.1} parent=1 // pred_fallthru
      _
    // Predicated region
    $region50: #{tpu_custom_call.1} parent=1 // pred_check
      _
    $region51: #{tpu_custom_call.1} parent=1 // pred_check_branch
      %115 = sbr.rel (0) target = $region53
    $region52: #{tpu_custom_call.1} parent=1 // pred_region
      %116 = dma.done [#allocation15], 512
    $region53: #{tpu_custom_call.1} parent=1 // pred_fallthru
      _
    // Predicated region
    $region54: #{tpu_custom_call.1} parent=1 // pred_check
      _
    $region55: #{tpu_custom_call.1} parent=1 // pred_check_branch
      %118 = sbr.rel (0) target = $region57
    $region56: #{tpu_custom_call.1} parent=1 // pred_region
      %119 = dma.done [#allocation15], 256
    $region57: #{tpu_custom_call.1} parent=1 // pred_fallthru
      _
    %p121 = scmp.eq.s32.totalorder 0, 0
    // Predicated region
    $region58: #{tpu_custom_call.1} parent=1 // pred_check
      %p122 = pneg %p121
    $region59: #{tpu_custom_call.1} parent=1 // pred_check_branch
      %124 = sbr.rel (%p122) target = $region61
    $region60: #{tpu_custom_call.1} parent=1 // pred_region
      %v125 = vld [vmem:[#allocation5] sm:$0xff]
      %v126 = vld [vmem:[#allocation5 + $0x8] sm:$0xff]
      %v127 = vrot.slane %v125, 7
      %v128 = vrot.slane %v126, 7
      %v129 = vlaneseq
      %v130 = vshrl.u32 %v129, 7
      %vm131 = vcmp.lt.s32.totalorder %v130, 1
      %v132 = vsel %vm131, %v127, %v128
      %v133 = vsel %vm131, %v128, %v127
      %v134 = vadd.s32 %v130, 8
      %v135 = vld [vmem:[#allocation8] sm:$0x1]
      %vm136 = vcmp.eq.s32.totalorder %v130, 0
      %vm137 = vcmp.eq.s32.totalorder %v134, 0
      %v138 = vsel %vm136, 1, 0
      %v139 = vsel %vm137, 1, 0
      %vm140 = vcmp.eq.s32.totalorder %v138, 1
      %vm141 = vcmp.eq.s32.totalorder %v139, 1
      %v143 = vlaneseq
      %v144 = vshrl.u32 %v143, 7
      %v145 = vsub.s32 0, %v144
      %v146 = vrot.slane %v135, %v145
      %v148 = vsel %vm140, %v146, %v133
      %v149 = vsel %vm141, %v146, %v132
      %v150 = vld [vmem:[#allocation10] sm:$0xff]
      %v151 = vld [vmem:[#allocation10 + $0x8] sm:$0xff]
      %153 = vset.pattern.permute.xlu0 0
      %154 = vperm.xlu0 %153, %v150
      %v155 = vpop.permute.xlu0 %154
      %158 = vset.pattern.permute.xlu0 0
      %159 = vperm.xlu0 %158, %v151
      %v160 = vpop.permute.xlu0 %159
      %v162 = vmul.f32 %v148, %v155
      %v163 = vmul.f32 %v149, %v160
      %v164 = vsub.f32 %v162, %v125
      %v165 = vsub.f32 %v163, %v126
      %v166 = vld [vmem:[#allocation11] sm:$0x1]
      %s167 = scalar_lea.vmem [#allocation11], 1
      %v168 = vld [vmem:[%s167] sm:$0x1]
      %v170 = vlaneseq
      %v171 = vshrl.u32 %v170, 7
      %v172 = vsub.s32 0, %v171
      %v173 = vrot.slane %v166, %v172
      %v175 = vmul.f32 %v164, %v173
      %v176 = vmul.f32 %v165, %v173
      %v177 = vadd.f32 %v125, %v175
      %v178 = vadd.f32 %v126, %v176
      %v179 = vpack.c.bf16 %v178, %v177
      %vm180 = vcmask 261120
      %181 = vst.msk [vmem:[#allocation2] sm:$0xff] %vm180, %v179
      %v183 = vlaneseq
      %v184 = vshrl.u32 %v183, 7
      %v185 = vsub.s32 0, %v184
      %v186 = vrot.slane %v168, %v185
      %v188 = vmul.f32 %v164, %v186
      %v189 = vmul.f32 %v165, %v186
      %v190 = vadd.f32 %v125, %v188
      %v191 = vadd.f32 %v126, %v189
      %v192 = vpack.c.bf16 %v191, %v190
      %193 = vst.msk [vmem:[#allocation3] sm:$0xff] %vm180, %v192
      %194 = vst.msk [vmem:[#allocation4] sm:$0xff] %vm180, 0.0
      %195 = vst.msk [vmem:[#allocation4 + $0x8] sm:$0xff] %vm180, 0.0
    $region61: #{tpu_custom_call.1} parent=1 // pred_fallthru
      _
    %v196 = vld [vmem:[#allocation2] sm:$0xff]
    %v197 = vld [vmem:[#allocation13] sm:$0xf]
    %v198 = vld [vmem:[#allocation13 + $0x4] sm:$0xf]
    %v199 = vld [vmem:[#allocation13 + $0x8] sm:$0xf]
    %v200 = vld [vmem:[#allocation13 + $0xc] sm:$0xf]
    %v205 = vunpack.c.l.b16 %v197
    %v206 = vunpack.c.l.b16 %v198
    %v207 = vunpack.c.l.b16 %v199
    %v208 = vunpack.c.l.b16 %v200
    %v209 = vpack.c.b16 %v206, %v205
    %v210 = vpack.c.b16 %v208, %v207
    %vm213 = vcmask 261120
    %v215 = vsel %vm213, %v196, 0
    %217 = vmatprep.subr.bf16.mxu0 0
    %218 = vmatpush1.bf16.msra.mxu0 %v209
    %219 = vmatprep.subr.bf16.mxu0 0
    %220 = vmatpush1.bf16.msra.mxu0 %v210
    %221 = vmatprep.subr.bf16.mxu0 0
    %222 = vmatpush1.bf16.msra.mxu0 0
    %223 = vmatprep.subr.bf16.mxu0 0
    %224 = vmatpush1.bf16.msra.mxu0 0
    %225 = vmatprep.subr.bf16.mxu0 0
    %226 = vmatpush1.bf16.msra.mxu0 0
    %227 = vmatprep.subr.bf16.mxu0 0
    %228 = vmatpush1.bf16.msra.mxu0 0
    %229 = vmatprep.subr.bf16.mxu0 0
    %230 = vmatpush1.bf16.msra.mxu0 0
    %231 = vmatprep.subr.bf16.mxu0 0
    %232 = vmatpush1.bf16.msra.mxu0 0
    %233 = vmatprep.subr.bf16.mxu0 0
    %234 = vmatpush1.bf16.msra.mxu0 0
    %235 = vmatprep.subr.bf16.mxu0 0
    %236 = vmatpush1.bf16.msra.mxu0 0
    %237 = vmatprep.subr.bf16.mxu0 0
    %238 = vmatpush1.bf16.msra.mxu0 0
    %239 = vmatprep.subr.bf16.mxu0 0
    %240 = vmatpush1.bf16.msra.mxu0 0
    %241 = vmatprep.subr.bf16.mxu0 0
    %242 = vmatpush1.bf16.msra.mxu0 0
    %243 = vmatprep.subr.bf16.mxu0 0
    %244 = vmatpush1.bf16.msra.mxu0 0
    %245 = vmatprep.subr.bf16.mxu0 0
    %246 = vmatpush1.bf16.msra.mxu0 0
    %247 = vmatprep.subr.bf16.mxu0 0
    %248 = vmatpush1.bf16.msra.mxu0 0
    %249 = vmatprep.mubr.bf16.mxu0 0
    %250 = vmatmul.mubr.bf16.gmra.mrb[0].mxu0 %v215
    %v251 = vpop.f32.mrb[0].mxu0
    %v252 = vadd.f32 0.0, %v251
    %v253 = vpop.f32.mrb[0].mxu0
    %v254 = vpop.f32.mrb[0].mxu0
    %v255 = vadd.f32 0.0, %v254
    %v256 = vpop.f32.mrb[0].mxu0
    %257 = vdwg.mxu0
    %v258 = vmax.f32 %v252, 0.0
    %v259 = vmax.f32 %v255, 0.0
    %v260 = vmul.f32 %v258, %v258
    %v261 = vmul.f32 %v259, %v259
    %v262 = vld [vmem:[#allocation4] sm:$0xff]
    %v263 = vld [vmem:[#allocation4 + $0x8] sm:$0xff]
    %v264 = vpack.c.bf16 %v261, %v260
    %v265 = vld [vmem:[#allocation14] sm:$0xf]
    %v266 = vld [vmem:[#allocation14 + $0x4] sm:$0xf]
    %v267 = vld [vmem:[#allocation14 + $0x8] sm:$0xf]
    %v268 = vld [vmem:[#allocation14 + $0xc] sm:$0xf]
    %v269 = vld [vmem:[#allocation14 + $0x10] sm:$0xf]
    %v270 = vld [vmem:[#allocation14 + $0x14] sm:$0xf]
    %v271 = vld [vmem:[#allocation14 + $0x18] sm:$0xf]
    %v272 = vld [vmem:[#allocation14 + $0x1c] sm:$0xf]
    %v281 = vunpack.c.l.b16 %v265
    %v282 = vunpack.c.l.b16 %v266
    %v283 = vunpack.c.l.b16 %v267
    %v284 = vunpack.c.l.b16 %v268
    %v285 = vunpack.c.l.b16 %v269
    %v286 = vunpack.c.l.b16 %v270
    %v287 = vunpack.c.l.b16 %v271
    %v288 = vunpack.c.l.b16 %v272
    %v289 = vpack.c.b16 %v282, %v281
    %v290 = vpack.c.b16 %v284, %v283
    %v291 = vpack.c.b16 %v286, %v285
    %v292 = vpack.c.b16 %v288, %v287
    %vm297 = vcmask 523264
    %v299 = vsel %vm297, %v264, 0
    %301 = vmatprep.subr.bf16.mxu0 0
    %302 = vmatpush1.bf16.msra.mxu0 %v289
    %303 = vmatprep.subr.bf16.mxu0 0
    %304 = vmatpush1.bf16.msra.mxu0 %v290
    %305 = vmatprep.subr.bf16.mxu0 0
    %306 = vmatpush1.bf16.msra.mxu0 %v291
    %307 = vmatprep.subr.bf16.mxu0 0
    %308 = vmatpush1.bf16.msra.mxu0 %v292
    %309 = vmatprep.subr.bf16.mxu0 0
    %310 = vmatpush1.bf16.msra.mxu0 0
    %311 = vmatprep.subr.bf16.mxu0 0
    %312 = vmatpush1.bf16.msra.mxu0 0
    %313 = vmatprep.subr.bf16.mxu0 0
    %314 = vmatpush1.bf16.msra.mxu0 0
    %315 = vmatprep.subr.bf16.mxu0 0
    %316 = vmatpush1.bf16.msra.mxu0 0
    %317 = vmatprep.subr.bf16.mxu0 0
    %318 = vmatpush1.bf16.msra.mxu0 0
    %319 = vmatprep.subr.bf16.mxu0 0
    %320 = vmatpush1.bf16.msra.mxu0 0
    %321 = vmatprep.subr.bf16.mxu0 0
    %322 = vmatpush1.bf16.msra.mxu0 0
    %323 = vmatprep.subr.bf16.mxu0 0
    %324 = vmatpush1.bf16.msra.mxu0 0
    %325 = vmatprep.subr.bf16.mxu0 0
    %326 = vmatpush1.bf16.msra.mxu0 0
    %327 = vmatprep.subr.bf16.mxu0 0
    %328 = vmatpush1.bf16.msra.mxu0 0
    %329 = vmatprep.subr.bf16.mxu0 0
    %330 = vmatpush1.bf16.msra.mxu0 0
    %331 = vmatprep.subr.bf16.mxu0 0
    %332 = vmatpush1.bf16.msra.mxu0 0
    %333 = vmatprep.mubr.bf16.mxu0 0
    %334 = vmatmul.mubr.bf16.gmra.mrb[0].mxu0 %v299
    %v335 = vpop.f32.mrb[0].mxu0
    %v336 = vadd.f32 0.0, %v335
    %v337 = vpop.f32.mrb[0].mxu0
    %v338 = vpop.f32.mrb[0].mxu0
    %v339 = vadd.f32 0.0, %v338
    %v340 = vpop.f32.mrb[0].mxu0
    %341 = vdwg.mxu0
    %v342 = vadd.f32 %v262, %v336
    %v343 = vadd.f32 %v263, %v339
    %344 = vst.msk [vmem:[#allocation4] sm:$0xff] %vm213, %v342
    %345 = vst.msk [vmem:[#allocation4 + $0x8] sm:$0xff] %vm213, %v343
    // Predicated region
    $region62: #{tpu_custom_call.1} parent=1 // pred_check
      %p346 = pneg %p121
    $region63: #{tpu_custom_call.1} parent=1 // pred_check_branch
      %348 = sbr.rel (%p346) target = $region65
    $region64: #{tpu_custom_call.1} parent=1 // pred_region
      %v349 = vld [vmem:[#allocation3] sm:$0xff]
      %v350 = vld [vmem:[#allocation16] sm:$0xf]
      %v351 = vld [vmem:[#allocation16 + $0x4] sm:$0xf]
      %v352 = vld [vmem:[#allocation16 + $0x8] sm:$0xf]
      %v353 = vld [vmem:[#allocation16 + $0xc] sm:$0xf]
      %v358 = vunpack.c.l.b16 %v350
      %v359 = vunpack.c.l.b16 %v351
      %v360 = vunpack.c.l.b16 %v352
      %v361 = vunpack.c.l.b16 %v353
      %v362 = vpack.c.b16 %v359, %v358
      %v363 = vpack.c.b16 %v361, %v360
      %v367 = vsel %vm213, %v349, 0
      %369 = vmatprep.subr.bf16.mxu0 0
      %370 = vmatpush1.bf16.msra.mxu0 %v362
      %371 = vmatprep.subr.bf16.mxu0 0
      %372 = vmatpush1.bf16.msra.mxu0 %v363
      %373 = vmatprep.subr.bf16.mxu0 0
      %374 = vmatpush1.bf16.msra.mxu0 0
      %375 = vmatprep.subr.bf16.mxu0 0
      %376 = vmatpush1.bf16.msra.mxu0 0
      %377 = vmatprep.subr.bf16.mxu0 0
      %378 = vmatpush1.bf16.msra.mxu0 0
      %379 = vmatprep.subr.bf16.mxu0 0
      %380 = vmatpush1.bf16.msra.mxu0 0
      %381 = vmatprep.subr.bf16.mxu0 0
      %382 = vmatpush1.bf16.msra.mxu0 0
      %383 = vmatprep.subr.bf16.mxu0 0
      %384 = vmatpush1.bf16.msra.mxu0 0
      %385 = vmatprep.subr.bf16.mxu0 0
      %386 = vmatpush1.bf16.msra.mxu0 0
      %387 = vmatprep.subr.bf16.mxu0 0
      %388 = vmatpush1.bf16.msra.mxu0 0
      %389 = vmatprep.subr.bf16.mxu0 0
      %390 = vmatpush1.bf16.msra.mxu0 0
      %391 = vmatprep.subr.bf16.mxu0 0
      %392 = vmatpush1.bf16.msra.mxu0 0
      %393 = vmatprep.subr.bf16.mxu0 0
      %394 = vmatpush1.bf16.msra.mxu0 0
      %395 = vmatprep.subr.bf16.mxu0 0
      %396 = vmatpush1.bf16.msra.mxu0 0
      %397 = vmatprep.subr.bf16.mxu0 0
      %398 = vmatpush1.bf16.msra.mxu0 0
      %399 = vmatprep.subr.bf16.mxu0 0
      %400 = vmatpush1.bf16.msra.mxu0 0
      %401 = vmatprep.mubr.bf16.mxu0 0
      %402 = vmatmul.mubr.bf16.gmra.mrb[0].mxu0 %v367
      %v403 = vpop.f32.mrb[0].mxu0
      %v404 = vadd.f32 0.0, %v403
      %v405 = vpop.f32.mrb[0].mxu0
      %v406 = vpop.f32.mrb[0].mxu0
      %v407 = vadd.f32 0.0, %v406
      %v408 = vpop.f32.mrb[0].mxu0
      %409 = vdwg.mxu0
      %v410 = vxor.u32 %v404, 2147483648
      %v411 = vxor.u32 %v407, 2147483648
      %v412 = vmul.f32 %v410, 1.442695
      %v413 = vpow.pop %v412
      %v414 = vmul.f32 %v411, 1.442695
      %v415 = vpow.pop %v414
      %v416 = vadd.f32 %v413, 1.0
      %v417 = vadd.f32 %v415, 1.0
      %v418 = vrcp.pop %v416
      %v419 = vmul.f32 1.0, %v418
      %v420 = vrcp.pop %v417
      %v421 = vmul.f32 1.0, %v420
      %v422 = vld [vmem:[#allocation4] sm:$0xff]
      %v423 = vld [vmem:[#allocation4 + $0x8] sm:$0xff]
      %v424 = vmul.f32 %v419, %v422
      %v425 = vmul.f32 %v421, %v423
      %426 = vst.msk [vmem:[#allocation17] sm:$0xff] %vm213, %v424
      %427 = vst.msk [vmem:[#allocation17 + $0x8] sm:$0xff] %vm213, %v425
    $region65: #{tpu_custom_call.1} parent=1 // pred_fallthru
      _
    // Predicated region
    $region66: #{tpu_custom_call.1} parent=1 // pred_check
      _
    $region67: #{tpu_custom_call.1} parent=1 // pred_check_branch
      %429 = sbr.rel (0) target = $region69
    $region68: #{tpu_custom_call.1} parent=1 // pred_region
      %s431 = ssub.s32 256, 256
      %432 = vsyncadd [#allocation7], %s431
      %s433 = sshll.u32 [#allocation17], 4
      %s434 = int_to_ptr.vmem [resolvable:$true] %s433
      %439 = dma.vmem_to_hbm [thread:$0]  %s434, 256, %s7, [#allocation7], 128, 128, 8
    $region69: #{tpu_custom_call.1} parent=1 // pred_fallthru
      _
    // Predicated region
    $region70: #{tpu_custom_call.1} parent=1 // pred_check
      _
    $region71: #{tpu_custom_call.1} parent=1 // pred_check_branch
      %441 = sbr.rel (0) target = $region73
    $region72: #{tpu_custom_call.1} parent=1 // pred_region
      %442 = dma.done [#allocation7], 256
    $region73: #{tpu_custom_call.1} parent=1 // pred_fallthru
      _
    %443 = vsyncpa [#allocation6], 1
    %444 = vsyncpa [#allocation9], 1
    %445 = vsyncpa [#allocation12], 1
    %446 = vsyncpa [#allocation15], 1
    %447 = vsyncpa [#allocation7], 1

</llo_original>
